<compile_context>
chip_gen: v7x
topology: tpu7x:2x2x1
jax: 0.10.0
libtpu: 0.0.40
codegen_flags: <defaults>
</compile_context>

<pallas_src>
import jax
import jax.numpy as jnp
from jax.experimental import pallas as pl
from jax.experimental.pallas import tpu as pltpu


# --------------------------------------------------------------------------- #
# Kernel
# --------------------------------------------------------------------------- #
def multiblock_kernel(x_ref, valid_ref,
                      wfl_ref, wfm_ref, wfr_ref, bf_ref,
                      bzl_ref, bzm_ref, bzr_ref, c1_ref,
                      a_ref, w2_ref, b2_ref,
                      out_ref):
    f32 = jnp.float32
    bt, _, lp = out_ref.shape                     # (BT, depth, Lp)

    # ---- k=3 taps from the conv-padded input block (all bf16, (BT, inc, Lp))
    xb = x_ref[...]                               # (BT, inc, Lp + 2)
    xl = xb[:, :, 0:lp]                           # x[l-1]  (left tap)
    xm = xb[:, :, 1:lp + 1]                       # x[l]    (center tap)
    xr = xb[:, :, 2:lp + 2]                       # x[l+1]  (right tap)

    def bdot(w_ref_, t):                          # (O,I) x (BT,I,Lp) -> (BT,O,Lp)
        w = jnp.broadcast_to(w_ref_[...], (bt,) + w_ref_.shape)
        return jnp.einsum('boi,bil->bol', w, t,
                          preferred_element_type=jnp.float32)

    # ---- main path: Wo @ BN(conv3(x)) fully folded -> 3 tap matmuls + bias
    o = (bdot(wfl_ref, xl) + bdot(wfm_ref, xm) + bdot(wfr_ref, xr)
         + bf_ref[...])                           # (BT, depth, Lp) f32

    # ---- SE path: per-batch pooled tap sums (the left tap is masked so the
    #      lane-padding region beyond L cannot leak x[L-1] into the mean).
    valid = valid_ref[...]                        # (1, Lp) 0/1 bf16
    p_l = jnp.sum((xl * valid).astype(f32), axis=-1, keepdims=True)  # (BT, inc, 1)
    p_m = jnp.sum(xm.astype(f32), axis=-1, keepdims=True)
    p_r = jnp.sum(xr.astype(f32), axis=-1, keepdims=True)

    def bvec(w_ref_, v):                          # (O,I) x (BT,I,1) -> (BT,O,1)
        w = jnp.broadcast_to(w_ref_[...], (bt,) + w_ref_.shape)
        return jnp.einsum('boi,bix->box', w, v,
                          preferred_element_type=jnp.float32)

    # first SE Linear is pre-folded with mean(1/L) and the branch-conv fold
    h = bvec(bzl_ref, p_l) + bvec(bzm_ref, p_m) + bvec(bzr_ref, p_r) + c1_ref[...]
    a = a_ref[0]                                  # PReLU slope (SMEM scalar)
    h = jnp.where(h >= 0, h, a * h)
    m = jax.nn.sigmoid(bvec(w2_ref, h) + b2_ref[...])   # (BT, depth, 1)

    # ---- SE scaling (free lane broadcast) + ReLU ----------------------------
    out_ref[...] = jnp.maximum(m * o, 0.0).astype(out_ref.dtype)


# --------------------------------------------------------------------------- #
# Wrapper
# --------------------------------------------------------------------------- #
def _fold_bn(gamma, beta, mean, var, eps=1e-3):
    scale = gamma / jnp.sqrt(var + eps)
    bias = beta - mean * scale
    return scale, bias


def _round_up(v, m):
    return (v + m - 1) // m * m


def _pick_lp(l):
    """Pad L to a multiple of 128 (lane-dense stores) only if the waste is
    modest; otherwise keep L (masked stores beat an 8x byte blow-up)."""
    lp = _round_up(l, 128)
    return lp if lp <= max(l + 32, int(1.3 * l)) else l


def _pick_bt(n, per_batch_bytes, budget):
    """Largest divisor of n within the VMEM budget that keeps >= 2 grid steps
    (so v7x's two TensorCores both get work); n==1 falls back to 1."""
    best = 1
    for bt in range(1, n + 1):
        if n % bt:
            continue
        if bt * per_batch_bytes > budget:
            continue
        if n // bt >= 2:
            best = bt
    return best


def multiblock_forward(x, params, depth, branchs):
    N, inc, L = x.shape
    f32, bf16 = jnp.float32, jnp.bfloat16
    col = lambda v: v.reshape(-1, 1).astype(f32)

    # ---- fold branch BNs into the k=3 conv weights:  A (DB, inc, 3), d (DB,)
    w3 = jnp.concatenate([w.astype(f32) for w in params["w3"]], axis=0)
    cb = jnp.concatenate([b.astype(f32) for b in params["b3"]], axis=0)
    g1 = jnp.concatenate(params["bn1_g"], axis=0)
    be1 = jnp.concatenate(params["bn1_b"], axis=0)
    mu1 = jnp.concatenate(params["bn1_m"], axis=0)
    v1 = jnp.concatenate(params["bn1_v"], axis=0)
    s1, t1 = _fold_bn(g1, be1, mu1, v1)
    A = s1[:, None, None] * w3                                  # (DB, inc, 3)
    d = s1 * cb + t1                                            # (DB,)

    # ---- fold the two bias-free 1x1 ouconvs + both BNs -> (depth, DB) map
    so1, to1 = _fold_bn(params["bno1_g"], params["bno1_b"],
                        params["bno1_m"], params["bno1_v"])
    so2, to2 = _fold_bn(params["bno2_g"], params["bno2_b"],
                        params["bno2_m"], params["bno2_v"])
    wo1 = params["wo1"].astype(f32)
    wo2 = params["wo2"].astype(f32)
    Wo = (so2[:, None] * wo2) @ (so1[:, None] * wo1)            # (depth, DB)
    bo = so2 * (wo2 @ to1) + to2                                # (depth,)

    # ---- main path fully folded: 3 per-tap (depth, inc) weights + bias (bf16)
    wf = [(Wo @ A[:, :, k]).astype(bf16) for k in range(3)]
    bf_col = col(Wo @ d + bo)                                   # (depth, 1)

    # ---- SE path: fold mean(1/L) and the first Linear through the branch fold
    W1 = params["se_w1"].astype(f32)                            # (H, DB)
    bz = [(W1 @ (A[:, :, k] / L)).astype(f32) for k in range(3)]  # (H, inc) each
    c1_col = col(W1 @ d + params["se_b1"].astype(f32))          # (H, 1)
    W2 = params["se_w2"].astype(f32)                            # (depth, H)
    b2_col = col(params["se_b2"])                               # (depth, 1)
    a = params["prelu_a"].reshape(1).astype(f32)                # SMEM scalar

    # ---- tiling: pad L only when cheap, pick BT from a VMEM budget ----------
    Lp = _pick_lp(L)
    per_batch = (2 * inc * (Lp + 2) * 2        # x block (bf16, double-buffered)
                 + 2 * depth * Lp * 4          # out block (f32, double-buffered)
                 + 3 * inc * Lp * 2            # tap slices (bf16)
                 + 2 * inc * Lp * 4            # f32 casts for pooling
                 + 2 * depth * Lp * 4)         # o accumulator + partials
    BT = _pick_bt(N, per_batch, budget=10 * 1024 * 1024)
    grid = (N // BT,)

    # conv-padded + lane-padded input, streamed once in bf16
    xp = jnp.pad(x.astype(bf16), ((0, 0), (0, 0), (1, Lp + 1 - L)))
    valid = (jnp.arange(Lp) < L).astype(bf16).reshape(1, Lp)

    args = (xp, valid, wf[0], wf[1], wf[2], bf_col,
            bz[0], bz[1], bz[2], c1_col, a, W2, b2_col)

    def full_spec(arr):
        nd = arr.ndim
        return pl.BlockSpec(arr.shape, lambda i, nd=nd: (0,) * nd)

    in_specs = [pl.BlockSpec((BT, inc, Lp + 2), lambda i: (i, 0, 0))]
    in_specs += [full_spec(z) for z in args[1:10]]
    in_specs += [pl.BlockSpec(memory_space=pltpu.MemorySpace.SMEM)]   # prelu slope
    in_specs += [full_spec(z) for z in args[11:]]

    out = pl.pallas_call(
        multiblock_kernel,
        out_shape=jax.ShapeDtypeStruct((N, depth, Lp), f32),
        grid=grid,
        in_specs=in_specs,
        out_specs=pl.BlockSpec((BT, depth, Lp), lambda i: (i, 0, 0)),
        compiler_params=pltpu.CompilerParams(
            dimension_semantics=("parallel",),
            vmem_limit_bytes=32 * 1024 * 1024),
    )(*args)

    # output is already (N, depth, Lp); drop lane padding if any (no transpose)
    return out if Lp == L else out[:, :, :L]


# --------------------------------------------------------------------------- #
# Pure-JAX reference (eval-mode BN), mirrors the PyTorch forward
# --------------------------------------------------------------------------- #
def multiblock_reference(x, params, depth, branchs, eps=1e-3):
    N, inc, L = x.shape
    xpad = jnp.pad(x, ((0, 0), (0, 0), (1, 1)))
    feas_list = []
    for b in range(branchs):
        w, bias = params["w3"][b], params["b3"][b]
        fea = sum(jnp.einsum("oi,nil->nol", w[:, :, k], xpad[:, :, k:k + L])
                  for k in range(3)) + bias[None, :, None]
        s, bb = _fold_bn(params["bn1_g"][b], params["bn1_b"][b],
                         params["bn1_m"][b], params["bn1_v"][b], eps)
        feas_list.append(fea * s[None, :, None] + bb[None, :, None])
    feas = jnp.concatenate(feas_list, axis=1)                        # (N, DB, L)
    z = feas.mean(axis=-1)                                           # (N, DB)
    h = z @ params["se_w1"].T + params["se_b1"]
    h = jnp.where(h >= 0, h, params["prelu_a"] * h)
    m = jax.nn.sigmoid(h @ params["se_w2"].T + params["se_b2"])      # (N, depth)
    mask = m[:, :, None]
    o = jnp.einsum("oi,nil->nol", params["wo1"], feas)
    s, bb = _fold_bn(params["bno1_g"], params["bno1_b"],
                     params["bno1_m"], params["bno1_v"], eps)
    o = o * s[None, :, None] + bb[None, :, None]
    o = jnp.einsum("oi,nil->nol", params["wo2"], o)
    s, bb = _fold_bn(params["bno2_g"], params["bno2_b"],
                     params["bno2_m"], params["bno2_v"], eps)
    o = o * s[None, :, None] + bb[None, :, None]
    return jnp.maximum(mask * o, 0.0)


def make_params(key, inc, depth, branchs, reduction):
    DB = depth * branchs
    H = DB // reduction
    ks = iter(jax.random.split(key, 32))
    n = lambda shape, scale=0.1: scale * jax.random.normal(next(ks), shape, jnp.float32)
    u = lambda shape: jax.random.uniform(next(ks), shape, jnp.float32, 0.5, 1.5)
    params = dict(
        w3=[n((depth, inc, 3)) for _ in range(branchs)],
        b3=[n((depth,)) for _ in range(branchs)],
        bn1_g=[u((depth,)) for _ in range(branchs)],
        bn1_b=[n((depth,)) for _ in range(branchs)],
        bn1_m=[n((depth,)) for _ in range(branchs)],
        bn1_v=[u((depth,)) for _ in range(branchs)],
        se_w1=n((H, DB)), se_b1=n((H,)),
        prelu_a=jnp.array(0.25, jnp.float32),
        se_w2=n((depth, H)), se_b2=n((depth,)),
        wo1=n((depth, DB)),
        bno1_g=u((depth,)), bno1_b=n((depth,)), bno1_m=n((depth,)), bno1_v=u((depth,)),
        wo2=n((depth, depth)),
        bno2_g=u((depth,)), bno2_b=n((depth,)), bno2_m=n((depth,)), bno2_v=u((depth,)),
    )
    return params


if __name__ == "__main__":
    N, inc, L = 2, 4, 16
    depth, branchs, reduction = 32, 2, 16

    key = jax.random.PRNGKey(0)
    kx, kp = jax.random.split(key)
    x = jax.random.normal(kx, (N, inc, L), jnp.float32)
    params = make_params(kp, inc, depth, branchs, reduction)

    out = multiblock_forward(x, params, depth, branchs)
    out = jax.block_until_ready(out)

    ref = jax.block_until_ready(multiblock_reference(x, params, depth, branchs))

    assert out.shape == (N, depth, L), out.shape
    assert jnp.allclose(out, ref, atol=2e-2, rtol=2e-2), \
        f"max abs diff {jnp.max(jnp.abs(out - ref))}"
    print("KERNEL_OK")
</pallas_src>

<mosaic_0001>
module attributes {stable_mosaic.version = 11 : i64} {
  func.func @multiblock_kernel(%arg0: i32, %arg1: memref<1x4x18xbf16, #tpu.memory_space<vmem>>, %arg2: memref<1x16xbf16, #tpu.memory_space<vmem>>, %arg3: memref<32x4xbf16, #tpu.memory_space<vmem>>, %arg4: memref<32x4xbf16, #tpu.memory_space<vmem>>, %arg5: memref<32x4xbf16, #tpu.memory_space<vmem>>, %arg6: memref<32x1xf32, #tpu.memory_space<vmem>>, %arg7: memref<4x4xf32, #tpu.memory_space<vmem>>, %arg8: memref<4x4xf32, #tpu.memory_space<vmem>>, %arg9: memref<4x4xf32, #tpu.memory_space<vmem>>, %arg10: memref<4x1xf32, #tpu.memory_space<vmem>>, %arg11: memref<1xf32, #tpu.memory_space<smem>>, %arg12: memref<32x4xf32, #tpu.memory_space<vmem>>, %arg13: memref<32x1xf32, #tpu.memory_space<vmem>>, %arg14: memref<1x32x16xf32, #tpu.memory_space<vmem>>) attributes {dimension_semantics = [#tpu.dimension_semantics<parallel>], iteration_bounds = array<i64: 2>, scalar_prefetch = 0 : i64, scratch_operands = 0 : i64, tpu.core_type = #tpu.core_type<tc>, window_params = [{transform_indices = @transform_0, window_bounds = array<i64: 1, 4, 18>}, {pipeline_mode = #tpu.pipeline_mode<synchronous>, transform_indices = @transform_1, window_bounds = array<i64: 1, 16>}, {pipeline_mode = #tpu.pipeline_mode<synchronous>, transform_indices = @transform_2, window_bounds = array<i64: 32, 4>}, {pipeline_mode = #tpu.pipeline_mode<synchronous>, transform_indices = @transform_3, window_bounds = array<i64: 32, 4>}, {pipeline_mode = #tpu.pipeline_mode<synchronous>, transform_indices = @transform_4, window_bounds = array<i64: 32, 4>}, {pipeline_mode = #tpu.pipeline_mode<synchronous>, transform_indices = @transform_5, window_bounds = array<i64: 32, 1>}, {pipeline_mode = #tpu.pipeline_mode<synchronous>, transform_indices = @transform_6, window_bounds = array<i64: 4, 4>}, {pipeline_mode = #tpu.pipeline_mode<synchronous>, transform_indices = @transform_7, window_bounds = array<i64: 4, 4>}, {pipeline_mode = #tpu.pipeline_mode<synchronous>, transform_indices = @transform_8, window_bounds = array<i64: 4, 4>}, {pipeline_mode = #tpu.pipeline_mode<synchronous>, transform_indices = @transform_9, window_bounds = array<i64: 4, 1>}, {transform_indices = @transform_10, window_bounds = array<i64: 1>}, {pipeline_mode = #tpu.pipeline_mode<synchronous>, transform_indices = @transform_11, window_bounds = array<i64: 32, 4>}, {pipeline_mode = #tpu.pipeline_mode<synchronous>, transform_indices = @transform_12, window_bounds = array<i64: 32, 1>}, {transform_indices = @transform_13, window_bounds = array<i64: 1, 32, 16>}]} {
    %c0 = arith.constant 0 : index
    %c0_0 = arith.constant 0 : index
    %c0_1 = arith.constant 0 : index
    %0 = vector.load %arg1[%c0, %c0_0, %c0_1] : memref<1x4x18xbf16, #tpu.memory_space<vmem>>, vector<1x4x18xbf16>
    %1 = vector.extract_strided_slice %0 {offsets = [0, 0, 0], sizes = [1, 4, 16], strides = [1, 1, 1]} : vector<1x4x18xbf16> to vector<1x4x16xbf16>
    %2 = vector.extract_strided_slice %0 {offsets = [0, 0, 1], sizes = [1, 4, 16], strides = [1, 1, 1]} : vector<1x4x18xbf16> to vector<1x4x16xbf16>
    %3 = vector.extract_strided_slice %0 {offsets = [0, 0, 2], sizes = [1, 4, 16], strides = [1, 1, 1]} : vector<1x4x18xbf16> to vector<1x4x16xbf16>
    %c0_2 = arith.constant 0 : index
    %c0_3 = arith.constant 0 : index
    %4 = vector.load %arg3[%c0_2, %c0_3] : memref<32x4xbf16, #tpu.memory_space<vmem>>, vector<32x4xbf16>
    %5 = vector.shape_cast %4 : vector<32x4xbf16> to vector<1x32x4xbf16>
    "tpu.trace_start"() <{level = 10 : i32, message = "boi,bil->bol"}> : () -> ()
    %cst = arith.constant dense<0.000000e+00> : vector<1x32x16xf32>
    %6 = tpu.matmul %5, %1, %cst {dimension_numbers = #tpu.dot_dimension_numbers<[2], [1], [1], [2], [0, 0, 0, 1, 1, 2], [0], [0]>} : vector<1x32x4xbf16>, vector<1x4x16xbf16>, vector<1x32x16xf32> -> vector<1x32x16xf32>
    "tpu.trace_stop"() : () -> ()
    %c0_4 = arith.constant 0 : index
    %c0_5 = arith.constant 0 : index
    %7 = vector.load %arg4[%c0_4, %c0_5] : memref<32x4xbf16, #tpu.memory_space<vmem>>, vector<32x4xbf16>
    %8 = vector.shape_cast %7 : vector<32x4xbf16> to vector<1x32x4xbf16>
    "tpu.trace_start"() <{level = 10 : i32, message = "boi,bil->bol"}> : () -> ()
    %cst_6 = arith.constant dense<0.000000e+00> : vector<1x32x16xf32>
    %9 = tpu.matmul %8, %2, %cst_6 {dimension_numbers = #tpu.dot_dimension_numbers<[2], [1], [1], [2], [0, 0, 0, 1, 1, 2], [0], [0]>} : vector<1x32x4xbf16>, vector<1x4x16xbf16>, vector<1x32x16xf32> -> vector<1x32x16xf32>
    "tpu.trace_stop"() : () -> ()
    %10 = arith.addf %6, %9 : vector<1x32x16xf32>
    %c0_7 = arith.constant 0 : index
    %c0_8 = arith.constant 0 : index
    %11 = vector.load %arg5[%c0_7, %c0_8] : memref<32x4xbf16, #tpu.memory_space<vmem>>, vector<32x4xbf16>
    %12 = vector.shape_cast %11 : vector<32x4xbf16> to vector<1x32x4xbf16>
    "tpu.trace_start"() <{level = 10 : i32, message = "boi,bil->bol"}> : () -> ()
    %cst_9 = arith.constant dense<0.000000e+00> : vector<1x32x16xf32>
    %13 = tpu.matmul %12, %3, %cst_9 {dimension_numbers = #tpu.dot_dimension_numbers<[2], [1], [1], [2], [0, 0, 0, 1, 1, 2], [0], [0]>} : vector<1x32x4xbf16>, vector<1x4x16xbf16>, vector<1x32x16xf32> -> vector<1x32x16xf32>
    "tpu.trace_stop"() : () -> ()
    %14 = arith.addf %10, %13 : vector<1x32x16xf32>
    %c0_10 = arith.constant 0 : index
    %c0_11 = arith.constant 0 : index
    %15 = vector.load %arg6[%c0_10, %c0_11] : memref<32x1xf32, #tpu.memory_space<vmem>>, vector<32x1xf32>
    %16 = vector.shape_cast %15 : vector<32x1xf32> to vector<1x32x1xf32>
    %17 = vector.broadcast %16 : vector<1x32x1xf32> to vector<1x32x16xf32>
    %18 = arith.addf %14, %17 : vector<1x32x16xf32>
    %c0_12 = arith.constant 0 : index
    %c0_13 = arith.constant 0 : index
    %19 = vector.load %arg2[%c0_12, %c0_13] : memref<1x16xbf16, #tpu.memory_space<vmem>>, vector<1x16xbf16>
    %20 = vector.shape_cast %19 : vector<1x16xbf16> to vector<1x1x16xbf16>
    %21 = vector.broadcast %20 : vector<1x1x16xbf16> to vector<1x4x16xbf16>
    %22 = arith.mulf %1, %21 : vector<1x4x16xbf16>
    %23 = arith.extf %22 : vector<1x4x16xbf16> to vector<1x4x16xf32>
    %cst_14 = arith.constant dense<0.000000e+00> : vector<1x4xf32>
    %24 = vector.multi_reduction <add>, %23, %cst_14 [2] : vector<1x4x16xf32> to vector<1x4xf32>
    %25 = vector.shape_cast %24 : vector<1x4xf32> to vector<1x4x1xf32>
    %26 = arith.extf %2 : vector<1x4x16xbf16> to vector<1x4x16xf32>
    %cst_15 = arith.constant dense<0.000000e+00> : vector<1x4xf32>
    %27 = vector.multi_reduction <add>, %26, %cst_15 [2] : vector<1x4x16xf32> to vector<1x4xf32>
    %28 = vector.shape_cast %27 : vector<1x4xf32> to vector<1x4x1xf32>
    %29 = arith.extf %3 : vector<1x4x16xbf16> to vector<1x4x16xf32>
    %cst_16 = arith.constant dense<0.000000e+00> : vector<1x4xf32>
    %30 = vector.multi_reduction <add>, %29, %cst_16 [2] : vector<1x4x16xf32> to vector<1x4xf32>
    %31 = vector.shape_cast %30 : vector<1x4xf32> to vector<1x4x1xf32>
    %c0_17 = arith.constant 0 : index
    %c0_18 = arith.constant 0 : index
    %32 = vector.load %arg7[%c0_17, %c0_18] : memref<4x4xf32, #tpu.memory_space<vmem>>, vector<4x4xf32>
    %33 = vector.shape_cast %32 : vector<4x4xf32> to vector<1x4x4xf32>
    "tpu.trace_start"() <{level = 10 : i32, message = "boi,bix->box"}> : () -> ()
    %cst_19 = arith.constant dense<0.000000e+00> : vector<1x4x1xf32>
    %34 = tpu.matmul %33, %25, %cst_19 {dimension_numbers = #tpu.dot_dimension_numbers<[2], [1], [1], [2], [0, 0, 0, 1, 1, 2], [0], [0]>} : vector<1x4x4xf32>, vector<1x4x1xf32>, vector<1x4x1xf32> -> vector<1x4x1xf32>
    "tpu.trace_stop"() : () -> ()
    %c0_20 = arith.constant 0 : index
    %c0_21 = arith.constant 0 : index
    %35 = vector.load %arg8[%c0_20, %c0_21] : memref<4x4xf32, #tpu.memory_space<vmem>>, vector<4x4xf32>
    %36 = vector.shape_cast %35 : vector<4x4xf32> to vector<1x4x4xf32>
    "tpu.trace_start"() <{level = 10 : i32, message = "boi,bix->box"}> : () -> ()
    %cst_22 = arith.constant dense<0.000000e+00> : vector<1x4x1xf32>
    %37 = tpu.matmul %36, %28, %cst_22 {dimension_numbers = #tpu.dot_dimension_numbers<[2], [1], [1], [2], [0, 0, 0, 1, 1, 2], [0], [0]>} : vector<1x4x4xf32>, vector<1x4x1xf32>, vector<1x4x1xf32> -> vector<1x4x1xf32>
    "tpu.trace_stop"() : () -> ()
    %38 = arith.addf %34, %37 : vector<1x4x1xf32>
    %c0_23 = arith.constant 0 : index
    %c0_24 = arith.constant 0 : index
    %39 = vector.load %arg9[%c0_23, %c0_24] : memref<4x4xf32, #tpu.memory_space<vmem>>, vector<4x4xf32>
    %40 = vector.shape_cast %39 : vector<4x4xf32> to vector<1x4x4xf32>
    "tpu.trace_start"() <{level = 10 : i32, message = "boi,bix->box"}> : () -> ()
    %cst_25 = arith.constant dense<0.000000e+00> : vector<1x4x1xf32>
    %41 = tpu.matmul %40, %31, %cst_25 {dimension_numbers = #tpu.dot_dimension_numbers<[2], [1], [1], [2], [0, 0, 0, 1, 1, 2], [0], [0]>} : vector<1x4x4xf32>, vector<1x4x1xf32>, vector<1x4x1xf32> -> vector<1x4x1xf32>
    "tpu.trace_stop"() : () -> ()
    %42 = arith.addf %38, %41 : vector<1x4x1xf32>
    %c0_26 = arith.constant 0 : index
    %c0_27 = arith.constant 0 : index
    %43 = vector.load %arg10[%c0_26, %c0_27] : memref<4x1xf32, #tpu.memory_space<vmem>>, vector<4x1xf32>
    %44 = vector.shape_cast %43 : vector<4x1xf32> to vector<1x4x1xf32>
    %45 = arith.addf %42, %44 : vector<1x4x1xf32>
    %c0_28 = arith.constant 0 : index
    %46 = memref.load %arg11[%c0_28] : memref<1xf32, #tpu.memory_space<smem>>
    %cst_29 = arith.constant 0.000000e+00 : f32
    %47 = vector.broadcast %cst_29 : f32 to vector<1x4x1xf32>
    %48 = arith.cmpf oge, %45, %47 : vector<1x4x1xf32>
    %49 = vector.broadcast %46 : f32 to vector<1x4x1xf32>
    %50 = arith.mulf %49, %45 : vector<1x4x1xf32>
    %51 = arith.select %48, %45, %50 : vector<1x4x1xi1>, vector<1x4x1xf32>
    %c0_30 = arith.constant 0 : index
    %c0_31 = arith.constant 0 : index
    %52 = vector.load %arg12[%c0_30, %c0_31] : memref<32x4xf32, #tpu.memory_space<vmem>>, vector<32x4xf32>
    %53 = vector.shape_cast %52 : vector<32x4xf32> to vector<1x32x4xf32>
    "tpu.trace_start"() <{level = 10 : i32, message = "boi,bix->box"}> : () -> ()
    %cst_32 = arith.constant dense<0.000000e+00> : vector<1x32x1xf32>
    %54 = tpu.matmul %53, %51, %cst_32 {dimension_numbers = #tpu.dot_dimension_numbers<[2], [1], [1], [2], [0, 0, 0, 1, 1, 2], [0], [0]>} : vector<1x32x4xf32>, vector<1x4x1xf32>, vector<1x32x1xf32> -> vector<1x32x1xf32>
    "tpu.trace_stop"() : () -> ()
    %c0_33 = arith.constant 0 : index
    %c0_34 = arith.constant 0 : index
    %55 = vector.load %arg13[%c0_33, %c0_34] : memref<32x1xf32, #tpu.memory_space<vmem>>, vector<32x1xf32>
    %56 = vector.shape_cast %55 : vector<32x1xf32> to vector<1x32x1xf32>
    %57 = arith.addf %54, %56 : vector<1x32x1xf32>
    %58 = arith.negf %57 : vector<1x32x1xf32>
    %59 = math.exp %58 : vector<1x32x1xf32>
    %cst_35 = arith.constant 1.000000e+00 : f32
    %60 = vector.broadcast %cst_35 : f32 to vector<1x32x1xf32>
    %61 = arith.addf %60, %59 : vector<1x32x1xf32>
    %62 = arith.divf %60, %61 : vector<1x32x1xf32>
    %63 = vector.broadcast %62 : vector<1x32x1xf32> to vector<1x32x16xf32>
    %64 = arith.mulf %63, %18 : vector<1x32x16xf32>
    %cst_36 = arith.constant 0.000000e+00 : f32
    %65 = vector.broadcast %cst_36 : f32 to vector<1x32x16xf32>
    %66 = arith.maximumf %64, %65 : vector<1x32x16xf32>
    %c0_37 = arith.constant 0 : index
    %c0_38 = arith.constant 0 : index
    %c0_39 = arith.constant 0 : index
    %67 = vector.load %arg14[%c0_37, %c0_38, %c0_39] : memref<1x32x16xf32, #tpu.memory_space<vmem>>, vector<1x32x16xf32>
    tpu.vector_store %arg14[%c0_37, %c0_38, %c0_39], %66 {strides = array<i32>} : memref<1x32x16xf32, #tpu.memory_space<vmem>>, vector<1x32x16xf32>,
    return
  }
  func.func @transform_0(%arg0: i32) -> (i32, i32, i32) {
    %c0_i32 = arith.constant 0 : i32
    %c0_i32_0 = arith.constant 0 : i32
    %c0_i32_1 = arith.constant 0 : i32
    return %arg0, %c0_i32, %c0_i32_0 : i32, i32, i32
  }
  func.func @transform_1(%arg0: i32) -> (i32, i32) {
    %c0_i32 = arith.constant 0 : i32
    %c0_i32_0 = arith.constant 0 : i32
    %c0_i32_1 = arith.constant 0 : i32
    return %c0_i32, %c0_i32_0 : i32, i32
  }
  func.func @transform_2(%arg0: i32) -> (i32, i32) {
    %c0_i32 = arith.constant 0 : i32
    %c0_i32_0 = arith.constant 0 : i32
    %c0_i32_1 = arith.constant 0 : i32
    return %c0_i32, %c0_i32_0 : i32, i32
  }
  func.func @transform_3(%arg0: i32) -> (i32, i32) {
    %c0_i32 = arith.constant 0 : i32
    %c0_i32_0 = arith.constant 0 : i32
    %c0_i32_1 = arith.constant 0 : i32
    return %c0_i32, %c0_i32_0 : i32, i32
  }
  func.func @transform_4(%arg0: i32) -> (i32, i32) {
    %c0_i32 = arith.constant 0 : i32
    %c0_i32_0 = arith.constant 0 : i32
    %c0_i32_1 = arith.constant 0 : i32
    return %c0_i32, %c0_i32_0 : i32, i32
  }
  func.func @transform_5(%arg0: i32) -> (i32, i32) {
    %c0_i32 = arith.constant 0 : i32
    %c0_i32_0 = arith.constant 0 : i32
    %c0_i32_1 = arith.constant 0 : i32
    return %c0_i32, %c0_i32_0 : i32, i32
  }
  func.func @transform_6(%arg0: i32) -> (i32, i32) {
    %c0_i32 = arith.constant 0 : i32
    %c0_i32_0 = arith.constant 0 : i32
    %c0_i32_1 = arith.constant 0 : i32
    return %c0_i32, %c0_i32_0 : i32, i32
  }
  func.func @transform_7(%arg0: i32) -> (i32, i32) {
    %c0_i32 = arith.constant 0 : i32
    %c0_i32_0 = arith.constant 0 : i32
    %c0_i32_1 = arith.constant 0 : i32
    return %c0_i32, %c0_i32_0 : i32, i32
  }
  func.func @transform_8(%arg0: i32) -> (i32, i32) {
    %c0_i32 = arith.constant 0 : i32
    %c0_i32_0 = arith.constant 0 : i32
    %c0_i32_1 = arith.constant 0 : i32
    return %c0_i32, %c0_i32_0 : i32, i32
  }
  func.func @transform_9(%arg0: i32) -> (i32, i32) {
    %c0_i32 = arith.constant 0 : i32
    %c0_i32_0 = arith.constant 0 : i32
    %c0_i32_1 = arith.constant 0 : i32
    return %c0_i32, %c0_i32_0 : i32, i32
  }
  func.func @transform_10(%arg0: i32) -> i32 {
    %c0_i32 = arith.constant 0 : i32
    %c0_i32_0 = arith.constant 0 : i32
    return %c0_i32 : i32
  }
  func.func @transform_11(%arg0: i32) -> (i32, i32) {
    %c0_i32 = arith.constant 0 : i32
    %c0_i32_0 = arith.constant 0 : i32
    %c0_i32_1 = arith.constant 0 : i32
    return %c0_i32, %c0_i32_0 : i32, i32
  }
  func.func @transform_12(%arg0: i32) -> (i32, i32) {
    %c0_i32 = arith.constant 0 : i32
    %c0_i32_0 = arith.constant 0 : i32
    %c0_i32_1 = arith.constant 0 : i32
    return %c0_i32, %c0_i32_0 : i32, i32
  }
  func.func @transform_13(%arg0: i32) -> (i32, i32, i32) {
    %c0_i32 = arith.constant 0 : i32
    %c0_i32_0 = arith.constant 0 : i32
    %c0_i32_1 = arith.constant 0 : i32
    return %arg0, %c0_i32, %c0_i32_0 : i32, i32, i32
  }
}

</mosaic_0001>

<llo_original>
// kernel: tpu_custom_call.1
$region0: #{tpu_custom_call.1}
  #allocation0 [shape = 'u32[]', space=smem, size = 0x4, offset = 0x4, fixed_abs, tag = 'smem constant byte address 0x4 - core index']
  #allocation1 [shape = 'u32[144,128]{1,0:T(1,128)}', space=vmem, size = 0x12000, scoped, tag = 'internal scratch']
  #allocation2 [shape = 'f32[1]{0:T(128)S(6)}', space=smem, size = 0x200, scoped, tag = 'scoped memory for tpu_custom_call.1']
  %s0 = inlined_call_operand.vmem [shape: bf16[2,4,18], index: 0, kind: input, shape index: {}]
  %s1 = inlined_call_operand.vmem [shape: bf16[1,16], index: 1, kind: input, shape index: {}]
  %s2 = inlined_call_operand.vmem [shape: bf16[32,4], index: 2, kind: input, shape index: {}]
  %s3 = inlined_call_operand.vmem [shape: bf16[32,4], index: 3, kind: input, shape index: {}]
  %s4 = inlined_call_operand.vmem [shape: bf16[32,4], index: 4, kind: input, shape index: {}]
  %s5 = inlined_call_operand.vmem [shape: f32[32,1], index: 5, kind: input, shape index: {}]
  %s6 = inlined_call_operand.vmem [shape: f32[4,4], index: 6, kind: input, shape index: {}]
  %s7 = inlined_call_operand.vmem [shape: f32[4,4], index: 7, kind: input, shape index: {}]
  %s8 = inlined_call_operand.vmem [shape: f32[4,4], index: 8, kind: input, shape index: {}]
  %s9 = inlined_call_operand.vmem [shape: f32[4,1], index: 9, kind: input, shape index: {}]
  %s10 = inlined_call_operand.<no memory space> [shape: f32[1], index: 10, kind: input, shape index: {}]
  %s11 = inlined_call_operand.vmem [shape: f32[32,4], index: 11, kind: input, shape index: {}]
  %s12 = inlined_call_operand.vmem [shape: f32[32,1], index: 12, kind: input, shape index: {}]
  %s13 = inlined_call_operand.vmem [shape: f32[2,32,16], index: 13, kind: output, shape index: {}]
  %s14 = sld [smem:[#allocation0]]
  $region85: #{tpu_custom_call.1} parent=0
    _
  %s16 = ssub.s32 1, %s14
  %s17 = scalar_select 0, %s16, %s14
  %18 = sst [smem:[#allocation2]] %s10
  loop: start=0, step=1, limit=4
  $region2: #{tpu_custom_call.1} parent=0 // loop_pre_header
    _
  $region3: #{tpu_custom_call.1} parent=0 // loop_header
    %s20 = sphi 0, %s24
    %p21 = scmp.ge.s32.totalorder %s20, 4
    %s30 = sphi 0, %s32
    %s33 = sphi 0, %s30
    %s34 = sphi 0, %s33
    %s50 = sphi 0, %s34
    %s54 = sphi 0, %s54
    %s56 = sphi 0, %s54
    %s57 = sphi 0, %s56
    %s71 = sphi 0, %s57
    %s75 = sphi 0, %s75
    %s77 = sphi 0, %s75
    %s78 = sphi 0, %s77
    %s92 = sphi 0, %s78
    %s96 = sphi 0, %s96
    %s98 = sphi 0, %s96
    %s99 = sphi 0, %s98
    %s113 = sphi 0, %s99
    %s117 = sphi 0, %s117
    %s119 = sphi 0, %s117
    %s120 = sphi 0, %s119
    %s134 = sphi 0, %s120
    %s138 = sphi 0, %s138
    %s140 = sphi 0, %s138
    %s141 = sphi 0, %s140
    %s155 = sphi 0, %s141
    %s159 = sphi 0, %s159
    %s161 = sphi 0, %s159
    %s162 = sphi 0, %s161
    %s176 = sphi 0, %s162
    %s180 = sphi 0, %s180
    %s182 = sphi 0, %s180
    %s183 = sphi 0, %s182
    %s197 = sphi 0, %s183
    %s201 = sphi 0, %s201
    %s203 = sphi 0, %s201
    %s204 = sphi 0, %s203
    %s218 = sphi 0, %s204
    %s222 = sphi 0, %s222
    %s224 = sphi 0, %s222
    %s225 = sphi 0, %s224
    %s239 = sphi 0, %s225
    %s243 = sphi 0, %s243
    %s245 = sphi 0, %s243
    %s246 = sphi 0, %s245
    %s260 = sphi 0, %s246
    %s264 = sphi 0, %s264
    %s266 = sphi 0, %s264
    %s267 = sphi 0, %s266
    %s281 = sphi 0, %s267
    %s285 = sphi 0, %s285
    %s287 = sphi 0, %s285
    %s288 = sphi 0, %s287
    %s302 = sphi 0, %s288
    %s308 = sphi 0, %s310
    %s311 = sphi 0, %s308
    %s312 = sphi 0, %s311
    %s328 = sphi 0, %s312
  $region4: #{tpu_custom_call.1} parent=0 // loop_header_branch
    %23 = sbr.rel (%p21) target = $region8
  $region5: #{tpu_custom_call.1} parent=0 // loop_body
    %s25 = ssub.s32 %s20, 1
    %s26 = ssub.s32 %s20, 2
    %s27 = sadd.s32 %s20, 1
    %s28 = ssub.s32 %s20, %s27
    %p29 = scmp.eq.s32.totalorder %s28, 0
    %s31 = sadd.s32 %s30, 1
    %s32 = scalar_select %p29, %s30, %s31
    %p35 = pneg %p29
    %p36 = scmp.eq.s32.totalorder %s20, 1
    %p37 = por %p35, %p36
    %p38 = scmp.ne.s32.totalorder %s30, %s33
    %p39 = scmp.eq.s32.totalorder %s20, 0
    %p40 = por %p38, %p39
    %p41 = scmp.ne.s32.totalorder %s30, %s33
    %p42 = scmp.eq.s32.totalorder %s25, 1
    %p43 = por %p41, %p42
    %p44 = scmp.ne.s32.totalorder %s33, %s34
    %p45 = scmp.eq.s32.totalorder %s25, 0
    %p46 = por %p44, %p45
    %p47 = scmp.ne.s32.totalorder %s33, %s34
    %p48 = scmp.eq.s32.totalorder %s26, 1
    %p49 = por %p47, %p48
    %p51 = scmp.ne.s32.totalorder %s34, %s50
    %p52 = scmp.eq.s32.totalorder %s26, 0
    %p53 = por %p51, %p52
    %s55 = sadd.s32 %s54, 1
    %p58 = scmp.eq.s32.totalorder %s20, 1
    %p59 = scmp.ne.s32.totalorder %s54, %s56
    %p60 = scmp.eq.s32.totalorder %s20, 0
    %p61 = por %p59, %p60
    %p62 = scmp.ne.s32.totalorder %s54, %s56
    %p63 = scmp.eq.s32.totalorder %s25, 1
    %p64 = por %p62, %p63
    %p65 = scmp.ne.s32.totalorder %s56, %s57
    %p66 = scmp.eq.s32.totalorder %s25, 0
    %p67 = por %p65, %p66
    %p68 = scmp.ne.s32.totalorder %s56, %s57
    %p69 = scmp.eq.s32.totalorder %s26, 1
    %p70 = por %p68, %p69
    %p72 = scmp.ne.s32.totalorder %s57, %s71
    %p73 = scmp.eq.s32.totalorder %s26, 0
    %p74 = por %p72, %p73
    %s76 = sadd.s32 %s75, 1
    %p79 = scmp.eq.s32.totalorder %s20, 1
    %p80 = scmp.ne.s32.totalorder %s75, %s77
    %p81 = scmp.eq.s32.totalorder %s20, 0
    %p82 = por %p80, %p81
    %p83 = scmp.ne.s32.totalorder %s75, %s77
    %p84 = scmp.eq.s32.totalorder %s25, 1
    %p85 = por %p83, %p84
    %p86 = scmp.ne.s32.totalorder %s77, %s78
    %p87 = scmp.eq.s32.totalorder %s25, 0
    %p88 = por %p86, %p87
    %p89 = scmp.ne.s32.totalorder %s77, %s78
    %p90 = scmp.eq.s32.totalorder %s26, 1
    %p91 = por %p89, %p90
    %p93 = scmp.ne.s32.totalorder %s78, %s92
    %p94 = scmp.eq.s32.totalorder %s26, 0
    %p95 = por %p93, %p94
    %s97 = sadd.s32 %s96, 1
    %p100 = scmp.eq.s32.totalorder %s20, 1
    %p101 = scmp.ne.s32.totalorder %s96, %s98
    %p102 = scmp.eq.s32.totalorder %s20, 0
    %p103 = por %p101, %p102
    %p104 = scmp.ne.s32.totalorder %s96, %s98
    %p105 = scmp.eq.s32.totalorder %s25, 1
    %p106 = por %p104, %p105
    %p107 = scmp.ne.s32.totalorder %s98, %s99
    %p108 = scmp.eq.s32.totalorder %s25, 0
    %p109 = por %p107, %p108
    %p110 = scmp.ne.s32.totalorder %s98, %s99
    %p111 = scmp.eq.s32.totalorder %s26, 1
    %p112 = por %p110, %p111
    %p114 = scmp.ne.s32.totalorder %s99, %s113
    %p115 = scmp.eq.s32.totalorder %s26, 0
    %p116 = por %p114, %p115
    %s118 = sadd.s32 %s117, 1
    %p121 = scmp.eq.s32.totalorder %s20, 1
    %p122 = scmp.ne.s32.totalorder %s117, %s119
    %p123 = scmp.eq.s32.totalorder %s20, 0
    %p124 = por %p122, %p123
    %p125 = scmp.ne.s32.totalorder %s117, %s119
    %p126 = scmp.eq.s32.totalorder %s25, 1
    %p127 = por %p125, %p126
    %p128 = scmp.ne.s32.totalorder %s119, %s120
    %p129 = scmp.eq.s32.totalorder %s25, 0
    %p130 = por %p128, %p129
    %p131 = scmp.ne.s32.totalorder %s119, %s120
    %p132 = scmp.eq.s32.totalorder %s26, 1
    %p133 = por %p131, %p132
    %p135 = scmp.ne.s32.totalorder %s120, %s134
    %p136 = scmp.eq.s32.totalorder %s26, 0
    %p137 = por %p135, %p136
    %s139 = sadd.s32 %s138, 1
    %p142 = scmp.eq.s32.totalorder %s20, 1
    %p143 = scmp.ne.s32.totalorder %s138, %s140
    %p144 = scmp.eq.s32.totalorder %s20, 0
    %p145 = por %p143, %p144
    %p146 = scmp.ne.s32.totalorder %s138, %s140
    %p147 = scmp.eq.s32.totalorder %s25, 1
    %p148 = por %p146, %p147
    %p149 = scmp.ne.s32.totalorder %s140, %s141
    %p150 = scmp.eq.s32.totalorder %s25, 0
    %p151 = por %p149, %p150
    %p152 = scmp.ne.s32.totalorder %s140, %s141
    %p153 = scmp.eq.s32.totalorder %s26, 1
    %p154 = por %p152, %p153
    %p156 = scmp.ne.s32.totalorder %s141, %s155
    %p157 = scmp.eq.s32.totalorder %s26, 0
    %p158 = por %p156, %p157
    %s160 = sadd.s32 %s159, 1
    %p163 = scmp.eq.s32.totalorder %s20, 1
    %p164 = scmp.ne.s32.totalorder %s159, %s161
    %p165 = scmp.eq.s32.totalorder %s20, 0
    %p166 = por %p164, %p165
    %p167 = scmp.ne.s32.totalorder %s159, %s161
    %p168 = scmp.eq.s32.totalorder %s25, 1
    %p169 = por %p167, %p168
    %p170 = scmp.ne.s32.totalorder %s161, %s162
    %p171 = scmp.eq.s32.totalorder %s25, 0
    %p172 = por %p170, %p171
    %p173 = scmp.ne.s32.totalorder %s161, %s162
    %p174 = scmp.eq.s32.totalorder %s26, 1
    %p175 = por %p173, %p174
    %p177 = scmp.ne.s32.totalorder %s162, %s176
    %p178 = scmp.eq.s32.totalorder %s26, 0
    %p179 = por %p177, %p178
    %s181 = sadd.s32 %s180, 1
    %p184 = scmp.eq.s32.totalorder %s20, 1
    %p185 = scmp.ne.s32.totalorder %s180, %s182
    %p186 = scmp.eq.s32.totalorder %s20, 0
    %p187 = por %p185, %p186
    %p188 = scmp.ne.s32.totalorder %s180, %s182
    %p189 = scmp.eq.s32.totalorder %s25, 1
    %p190 = por %p188, %p189
    %p191 = scmp.ne.s32.totalorder %s182, %s183
    %p192 = scmp.eq.s32.totalorder %s25, 0
    %p193 = por %p191, %p192
    %p194 = scmp.ne.s32.totalorder %s182, %s183
    %p195 = scmp.eq.s32.totalorder %s26, 1
    %p196 = por %p194, %p195
    %p198 = scmp.ne.s32.totalorder %s183, %s197
    %p199 = scmp.eq.s32.totalorder %s26, 0
    %p200 = por %p198, %p199
    %s202 = sadd.s32 %s201, 1
    %p205 = scmp.eq.s32.totalorder %s20, 1
    %p206 = scmp.ne.s32.totalorder %s201, %s203
    %p207 = scmp.eq.s32.totalorder %s20, 0
    %p208 = por %p206, %p207
    %p209 = scmp.ne.s32.totalorder %s201, %s203
    %p210 = scmp.eq.s32.totalorder %s25, 1
    %p211 = por %p209, %p210
    %p212 = scmp.ne.s32.totalorder %s203, %s204
    %p213 = scmp.eq.s32.totalorder %s25, 0
    %p214 = por %p212, %p213
    %p215 = scmp.ne.s32.totalorder %s203, %s204
    %p216 = scmp.eq.s32.totalorder %s26, 1
    %p217 = por %p215, %p216
    %p219 = scmp.ne.s32.totalorder %s204, %s218
    %p220 = scmp.eq.s32.totalorder %s26, 0
    %p221 = por %p219, %p220
    %s223 = sadd.s32 %s222, 1
    %p226 = scmp.eq.s32.totalorder %s20, 1
    %p227 = scmp.ne.s32.totalorder %s222, %s224
    %p228 = scmp.eq.s32.totalorder %s20, 0
    %p229 = por %p227, %p228
    %p230 = scmp.ne.s32.totalorder %s222, %s224
    %p231 = scmp.eq.s32.totalorder %s25, 1
    %p232 = por %p230, %p231
    %p233 = scmp.ne.s32.totalorder %s224, %s225
    %p234 = scmp.eq.s32.totalorder %s25, 0
    %p235 = por %p233, %p234
    %p236 = scmp.ne.s32.totalorder %s224, %s225
    %p237 = scmp.eq.s32.totalorder %s26, 1
    %p238 = por %p236, %p237
    %p240 = scmp.ne.s32.totalorder %s225, %s239
    %p241 = scmp.eq.s32.totalorder %s26, 0
    %p242 = por %p240, %p241
    %s244 = sadd.s32 %s243, 1
    %p247 = scmp.eq.s32.totalorder %s20, 1
    %p248 = scmp.ne.s32.totalorder %s243, %s245
    %p249 = scmp.eq.s32.totalorder %s20, 0
    %p250 = por %p248, %p249
    %p251 = scmp.ne.s32.totalorder %s243, %s245
    %p252 = scmp.eq.s32.totalorder %s25, 1
    %p253 = por %p251, %p252
    %p254 = scmp.ne.s32.totalorder %s245, %s246
    %p255 = scmp.eq.s32.totalorder %s25, 0
    %p256 = por %p254, %p255
    %p257 = scmp.ne.s32.totalorder %s245, %s246
    %p258 = scmp.eq.s32.totalorder %s26, 1
    %p259 = por %p257, %p258
    %p261 = scmp.ne.s32.totalorder %s246, %s260
    %p262 = scmp.eq.s32.totalorder %s26, 0
    %p263 = por %p261, %p262
    %s265 = sadd.s32 %s264, 1
    %p268 = scmp.eq.s32.totalorder %s20, 1
    %p269 = scmp.ne.s32.totalorder %s264, %s266
    %p270 = scmp.eq.s32.totalorder %s20, 0
    %p271 = por %p269, %p270
    %p272 = scmp.ne.s32.totalorder %s264, %s266
    %p273 = scmp.eq.s32.totalorder %s25, 1
    %p274 = por %p272, %p273
    %p275 = scmp.ne.s32.totalorder %s266, %s267
    %p276 = scmp.eq.s32.totalorder %s25, 0
    %p277 = por %p275, %p276
    %p278 = scmp.ne.s32.totalorder %s266, %s267
    %p279 = scmp.eq.s32.totalorder %s26, 1
    %p280 = por %p278, %p279
    %p282 = scmp.ne.s32.totalorder %s267, %s281
    %p283 = scmp.eq.s32.totalorder %s26, 0
    %p284 = por %p282, %p283
    %s286 = sadd.s32 %s285, 1
    %p289 = scmp.eq.s32.totalorder %s20, 1
    %p290 = scmp.ne.s32.totalorder %s285, %s287
    %p291 = scmp.eq.s32.totalorder %s20, 0
    %p292 = por %p290, %p291
    %p293 = scmp.ne.s32.totalorder %s285, %s287
    %p294 = scmp.eq.s32.totalorder %s25, 1
    %p295 = por %p293, %p294
    %p296 = scmp.ne.s32.totalorder %s287, %s288
    %p297 = scmp.eq.s32.totalorder %s25, 0
    %p298 = por %p296, %p297
    %p299 = scmp.ne.s32.totalorder %s287, %s288
    %p300 = scmp.eq.s32.totalorder %s26, 1
    %p301 = por %p299, %p300
    %p303 = scmp.ne.s32.totalorder %s288, %s302
    %p304 = scmp.eq.s32.totalorder %s26, 0
    %p305 = por %p303, %p304
    %s306 = ssub.s32 %s20, %s27
    %p307 = scmp.eq.s32.totalorder %s306, 0
    %s309 = sadd.s32 %s308, 1
    %s310 = scalar_select %p307, %s308, %s309
    %p313 = pneg %p307
    %p314 = scmp.eq.s32.totalorder %s20, 1
    %p315 = por %p313, %p314
    %p316 = scmp.ne.s32.totalorder %s308, %s311
    %p317 = scmp.eq.s32.totalorder %s20, 0
    %p318 = por %p316, %p317
    %p319 = scmp.ne.s32.totalorder %s308, %s311
    %p320 = scmp.eq.s32.totalorder %s25, 1
    %p321 = por %p319, %p320
    %p322 = scmp.ne.s32.totalorder %s311, %s312
    %p323 = scmp.eq.s32.totalorder %s25, 0
    %p324 = por %p322, %p323
    %p325 = scmp.ne.s32.totalorder %s311, %s312
    %p326 = scmp.eq.s32.totalorder %s26, 1
    %p327 = por %p325, %p326
    %p329 = scmp.ne.s32.totalorder %s312, %s328
    %p330 = scmp.eq.s32.totalorder %s26, 0
    %p331 = por %p329, %p330
    %p332 = scmp.le.s32.totalorder 1, %s20
    %p333 = scmp.lt.s32.totalorder %s20, 3
    %p334 = pnand %p332, %p333
    %p335 = pneg %p334
    // Predicated region
    $region9: #{tpu_custom_call.1} parent=5 // pred_check
      _
    $region10: #{tpu_custom_call.1} parent=5 // pred_check_branch
      %337 = sbr.rel (%p334) target = $region12
    $region11: #{tpu_custom_call.1} parent=5 // pred_region
      %s338 = ssub.s32 %s20, 1
      // Predicated region
      $region13: #{tpu_custom_call.1} parent=11 // pred_check
        %p339 = pneg %p67
      $region14: #{tpu_custom_call.1} parent=11 // pred_check_branch
        %341 = sbr.rel (%p339) target = $region16
      $region15: #{tpu_custom_call.1} parent=11 // pred_region
        _
      $region16: #{tpu_custom_call.1} parent=11 // pred_fallthru
        _
      // Predicated region
      $region17: #{tpu_custom_call.1} parent=11 // pred_check
        %p342 = pneg %p88
      $region18: #{tpu_custom_call.1} parent=11 // pred_check_branch
        %344 = sbr.rel (%p342) target = $region20
      $region19: #{tpu_custom_call.1} parent=11 // pred_region
        _
      $region20: #{tpu_custom_call.1} parent=11 // pred_fallthru
        _
      // Predicated region
      $region21: #{tpu_custom_call.1} parent=11 // pred_check
        %p345 = pneg %p109
      $region22: #{tpu_custom_call.1} parent=11 // pred_check_branch
        %347 = sbr.rel (%p345) target = $region24
      $region23: #{tpu_custom_call.1} parent=11 // pred_region
        _
      $region24: #{tpu_custom_call.1} parent=11 // pred_fallthru
        _
      // Predicated region
      $region25: #{tpu_custom_call.1} parent=11 // pred_check
        %p348 = pneg %p130
      $region26: #{tpu_custom_call.1} parent=11 // pred_check_branch
        %350 = sbr.rel (%p348) target = $region28
      $region27: #{tpu_custom_call.1} parent=11 // pred_region
        _
      $region28: #{tpu_custom_call.1} parent=11 // pred_fallthru
        _
      // Predicated region
      $region29: #{tpu_custom_call.1} parent=11 // pred_check
        %p351 = pneg %p151
      $region30: #{tpu_custom_call.1} parent=11 // pred_check_branch
        %353 = sbr.rel (%p351) target = $region32
      $region31: #{tpu_custom_call.1} parent=11 // pred_region
        _
      $region32: #{tpu_custom_call.1} parent=11 // pred_fallthru
        _
      // Predicated region
      $region33: #{tpu_custom_call.1} parent=11 // pred_check
        %p354 = pneg %p172
      $region34: #{tpu_custom_call.1} parent=11 // pred_check_branch
        %356 = sbr.rel (%p354) target = $region36
      $region35: #{tpu_custom_call.1} parent=11 // pred_region
        _
      $region36: #{tpu_custom_call.1} parent=11 // pred_fallthru
        _
      // Predicated region
      $region37: #{tpu_custom_call.1} parent=11 // pred_check
        %p357 = pneg %p193
      $region38: #{tpu_custom_call.1} parent=11 // pred_check_branch
        %359 = sbr.rel (%p357) target = $region40
      $region39: #{tpu_custom_call.1} parent=11 // pred_region
        _
      $region40: #{tpu_custom_call.1} parent=11 // pred_fallthru
        _
      // Predicated region
      $region41: #{tpu_custom_call.1} parent=11 // pred_check
        %p360 = pneg %p214
      $region42: #{tpu_custom_call.1} parent=11 // pred_check_branch
        %362 = sbr.rel (%p360) target = $region44
      $region43: #{tpu_custom_call.1} parent=11 // pred_region
        _
      $region44: #{tpu_custom_call.1} parent=11 // pred_fallthru
        _
      // Predicated region
      $region45: #{tpu_custom_call.1} parent=11 // pred_check
        %p363 = pneg %p235
      $region46: #{tpu_custom_call.1} parent=11 // pred_check_branch
        %365 = sbr.rel (%p363) target = $region48
      $region47: #{tpu_custom_call.1} parent=11 // pred_region
        _
      $region48: #{tpu_custom_call.1} parent=11 // pred_fallthru
        _
      // Predicated region
      $region49: #{tpu_custom_call.1} parent=11 // pred_check
        %p366 = pneg %p256
      $region50: #{tpu_custom_call.1} parent=11 // pred_check_branch
        %368 = sbr.rel (%p366) target = $region52
      $region51: #{tpu_custom_call.1} parent=11 // pred_region
        _
      $region52: #{tpu_custom_call.1} parent=11 // pred_fallthru
        _
      // Predicated region
      $region53: #{tpu_custom_call.1} parent=11 // pred_check
        %p369 = pneg %p277
      $region54: #{tpu_custom_call.1} parent=11 // pred_check_branch
        %371 = sbr.rel (%p369) target = $region56
      $region55: #{tpu_custom_call.1} parent=11 // pred_region
        _
      $region56: #{tpu_custom_call.1} parent=11 // pred_fallthru
        _
      // Predicated region
      $region57: #{tpu_custom_call.1} parent=11 // pred_check
        %p372 = pneg %p298
      $region58: #{tpu_custom_call.1} parent=11 // pred_check_branch
        %374 = sbr.rel (%p372) target = $region60
      $region59: #{tpu_custom_call.1} parent=11 // pred_region
        _
      $region60: #{tpu_custom_call.1} parent=11 // pred_fallthru
        _
    $region12: #{tpu_custom_call.1} parent=5 // pred_fallthru
      _
    %p375 = scmp.lt.s32.totalorder %s20, 2
    // Predicated region
    $region61: #{tpu_custom_call.1} parent=5 // pred_check
      %p376 = pneg %p375
    $region62: #{tpu_custom_call.1} parent=5 // pred_check_branch
      %378 = sbr.rel (%p376) target = $region64
    $region63: #{tpu_custom_call.1} parent=5 // pred_region
      // Predicated region
      $region65: #{tpu_custom_call.1} parent=63 // pred_check
        %p379 = pneg %p40
      $region66: #{tpu_custom_call.1} parent=63 // pred_check_branch
        %381 = sbr.rel (%p379) target = $region68
      $region67: #{tpu_custom_call.1} parent=63 // pred_region
        %p382 = scmp.lt.s32.totalorder %s20, 1
        %s383 = scalar_select %p382, %s20, 1
        %s384 = smul.addr %s383, 2
        %s385 = scalar_lea.vmem %s0, %s384
      $region68: #{tpu_custom_call.1} parent=63 // pred_fallthru
        _
    $region64: #{tpu_custom_call.1} parent=5 // pred_fallthru
      _
    %p386 = scmp.le.s32.totalorder 1, %s20
    %p387 = scmp.lt.s32.totalorder %s20, 3
    %p388 = pnand %p386, %p387
    %p389 = pneg %p388
    // Predicated region
    $region69: #{tpu_custom_call.1} parent=5 // pred_check
      _
    $region70: #{tpu_custom_call.1} parent=5 // pred_check_branch
      %391 = sbr.rel (%p388) target = $region72
    $region71: #{tpu_custom_call.1} parent=5 // pred_region
      %s392 = ssub.s32 %s20, 1
      %p393 = scmp.lt.s32.totalorder %s25, 1
      %s394 = scalar_select %p393, %s25, 1
      %s395 = smul.addr %s394, 2
      %s396 = scalar_lea.vmem %s0, %s395
      %p397 = pneg %p46
      %p398 = pneg %p43
      %p399 = pneg %p67
      %p400 = pneg %p64
      %p401 = pneg %p88
      %p402 = pneg %p85
      %p403 = pneg %p109
      %p404 = pneg %p106
      %p405 = pneg %p130
      %p406 = pneg %p127
      %p407 = pneg %p151
      %p408 = pneg %p148
      %p409 = pneg %p172
      %p410 = pneg %p169
      %p411 = pneg %p193
      %p412 = pneg %p190
      %p413 = pneg %p214
      %p414 = pneg %p211
      %p415 = pneg %p235
      %p416 = pneg %p232
      %p417 = pneg %p256
      %p418 = pneg %p253
      %p419 = pneg %p277
      %p420 = pneg %p274
      %p421 = pneg %p298
      %p422 = pneg %p295
      %p423 = pneg %p324
      %p424 = pneg %p321
      %p425 = scmp.lt.s32.totalorder %s25, 1
      %s426 = scalar_select %p425, %s25, 1
      %s427 = smul.addr %s426, 4
      %s428 = smul.addr %s427, 8
      %s429 = scalar_lea.vmem %s13, %s428
      %p430 = scmp.lt.s32.totalorder %s25, 1
      %s431 = scalar_select %p430, %s25, 1
      %s432 = smul.addr %s431, 2
      %s433 = scalar_lea.vmem %s0, %s432
      %p434 = scmp.lt.s32.totalorder %s25, 1
      %s435 = scalar_select %p434, %s25, 1
      %s436 = smul.addr %s435, 4
      %s437 = smul.addr %s436, 8
      %s438 = scalar_lea.vmem %s13, %s437
      %v440 = vld [vmem:[%s433] sm:$0x3]
      %v441 = vld [vmem:[%s2] sm:$0xf]
      %v442 = vld [vmem:[%s2 + $0x4] sm:$0xf]
      %v443 = vld [vmem:[%s2 + $0x8] sm:$0xf]
      %v444 = vld [vmem:[%s2 + $0xc] sm:$0xf]
      %v445 = vld [vmem:[%s3] sm:$0xf]
      %v446 = vld [vmem:[%s3 + $0x4] sm:$0xf]
      %v447 = vld [vmem:[%s3 + $0x8] sm:$0xf]
      %v448 = vld [vmem:[%s3 + $0xc] sm:$0xf]
      %v453 = vunpack.c.l.b16 %v445
      %v454 = vunpack.c.l.b16 %v446
      %v455 = vunpack.c.l.b16 %v447
      %v456 = vunpack.c.l.b16 %v448
      %v457 = vpack.c.b16 %v454, %v453
      %v458 = vpack.c.b16 %v456, %v455
      %v461 = vunpack.c.l.s4 1983009808
      %v462 = vunpack.c.0.s8 %v461
      %v463 = vlaneseq
      %v464 = vshrl.u32 %v463, 7
      %v465 = vsub.s32 %v462, %v464
      %v466 = vrot.slane %v440, %v465
      %467 = vrot.lane.b32.xlu0 %v466, 127
      %v468 = vpop.permute.xlu0 %467
      %vm469 = vcmask 31744
      %v471 = vsel %vm469, %v457, 0
      %v474 = vsel %vm469, %v458, 0
      %vm476 = vcmask 1041408
      %v478 = vsel %vm476, %v468, 0
      %480 = vmatprep.subr.bf16.mxu0 0
      %481 = vmatpush1.bf16.msra.mxu0 %v478
      %482 = vmatprep.subr.bf16.mxu0 0
      %483 = vmatpush1.bf16.msra.mxu0 0
      %484 = vmatprep.subr.bf16.mxu0 0
      %485 = vmatpush1.bf16.msra.mxu0 0
      %486 = vmatprep.subr.bf16.mxu0 0
      %487 = vmatpush1.bf16.msra.mxu0 0
      %488 = vmatprep.subr.bf16.mxu0 0
      %489 = vmatpush1.bf16.msra.mxu0 0
      %490 = vmatprep.subr.bf16.mxu0 0
      %491 = vmatpush1.bf16.msra.mxu0 0
      %492 = vmatprep.subr.bf16.mxu0 0
      %493 = vmatpush1.bf16.msra.mxu0 0
      %494 = vmatprep.subr.bf16.mxu0 0
      %495 = vmatpush1.bf16.msra.mxu0 0
      %496 = vmatprep.subr.bf16.mxu0 0
      %497 = vmatpush1.bf16.msra.mxu0 0
      %498 = vmatprep.subr.bf16.mxu0 0
      %499 = vmatpush1.bf16.msra.mxu0 0
      %500 = vmatprep.subr.bf16.mxu0 0
      %501 = vmatpush1.bf16.msra.mxu0 0
      %502 = vmatprep.subr.bf16.mxu0 0
      %503 = vmatpush1.bf16.msra.mxu0 0
      %504 = vmatprep.subr.bf16.mxu0 0
      %505 = vmatpush1.bf16.msra.mxu0 0
      %506 = vmatprep.subr.bf16.mxu0 0
      %507 = vmatpush1.bf16.msra.mxu0 0
      %508 = vmatprep.subr.bf16.mxu0 0
      %509 = vmatpush1.bf16.msra.mxu0 0
      %510 = vmatprep.subr.bf16.mxu0 0
      %511 = vmatpush1.bf16.msra.mxu0 0
      %512 = vmatprep.mubr.bf16.mxu0 0
      %513 = vmatmul.mubr.bf16.gmra.mrb[0].mxu0 %v471
      %v514 = vpop.f32.mrb[0].mxu0
      %v515 = vadd.f32 0.0, %v514
      %v516 = vpop.f32.mrb[0].mxu0
      %v517 = vpop.f32.mrb[0].mxu0
      %v518 = vadd.f32 0.0, %v517
      %v519 = vpop.f32.mrb[0].mxu0
      %520 = vmatprep.mubr.bf16.mxu0 0
      %521 = vmatmul.mubr.bf16.gmra.mrb[0].mxu0 %v474
      %v522 = vpop.f32.mrb[0].mxu0
      %v523 = vadd.f32 0.0, %v522
      %v524 = vpop.f32.mrb[0].mxu0
      %v525 = vpop.f32.mrb[0].mxu0
      %v526 = vadd.f32 0.0, %v525
      %v527 = vpop.f32.mrb[0].mxu0
      %528 = vdwg.mxu0
      %v533 = vunpack.c.l.b16 %v441
      %v534 = vunpack.c.l.b16 %v442
      %v535 = vunpack.c.l.b16 %v443
      %v536 = vunpack.c.l.b16 %v444
      %v537 = vpack.c.b16 %v534, %v533
      %v538 = vpack.c.b16 %v536, %v535
      %v540 = vsel %vm469, %v537, 0
      %v543 = vsel %vm469, %v538, 0
      %v546 = vsel %vm476, %v440, 0
      %548 = vmatprep.subr.bf16.mxu0 0
      %549 = vmatpush1.bf16.msra.mxu0 %v546
      %550 = vmatprep.subr.bf16.mxu0 0
      %551 = vmatpush1.bf16.msra.mxu0 0
      %552 = vmatprep.subr.bf16.mxu0 0
      %553 = vmatpush1.bf16.msra.mxu0 0
      %554 = vmatprep.subr.bf16.mxu0 0
      %555 = vmatpush1.bf16.msra.mxu0 0
      %556 = vmatprep.subr.bf16.mxu0 0
      %557 = vmatpush1.bf16.msra.mxu0 0
      %558 = vmatprep.subr.bf16.mxu0 0
      %559 = vmatpush1.bf16.msra.mxu0 0
      %560 = vmatprep.subr.bf16.mxu0 0
      %561 = vmatpush1.bf16.msra.mxu0 0
      %562 = vmatprep.subr.bf16.mxu0 0
      %563 = vmatpush1.bf16.msra.mxu0 0
      %564 = vmatprep.subr.bf16.mxu0 0
      %565 = vmatpush1.bf16.msra.mxu0 0
      %566 = vmatprep.subr.bf16.mxu0 0
      %567 = vmatpush1.bf16.msra.mxu0 0
      %568 = vmatprep.subr.bf16.mxu0 0
      %569 = vmatpush1.bf16.msra.mxu0 0
      %570 = vmatprep.subr.bf16.mxu0 0
      %571 = vmatpush1.bf16.msra.mxu0 0
      %572 = vmatprep.subr.bf16.mxu0 0
      %573 = vmatpush1.bf16.msra.mxu0 0
      %574 = vmatprep.subr.bf16.mxu0 0
      %575 = vmatpush1.bf16.msra.mxu0 0
      %576 = vmatprep.subr.bf16.mxu0 0
      %577 = vmatpush1.bf16.msra.mxu0 0
      %578 = vmatprep.subr.bf16.mxu0 0
      %579 = vmatpush1.bf16.msra.mxu0 0
      %580 = vmatprep.mubr.bf16.mxu0 0
      %581 = vmatmul.mubr.bf16.gmra.mrb[0].mxu0 %v540
      %v582 = vpop.f32.mrb[0].mxu0
      %v583 = vadd.f32 %v515, %v582
      %v584 = vpop.f32.mrb[0].mxu0
      %v585 = vpop.f32.mrb[0].mxu0
      %v586 = vadd.f32 %v518, %v585
      %v587 = vpop.f32.mrb[0].mxu0
      %588 = vmatprep.mubr.bf16.mxu0 0
      %589 = vmatmul.mubr.bf16.gmra.mrb[0].mxu0 %v543
      %v590 = vpop.f32.mrb[0].mxu0
      %v591 = vadd.f32 %v523, %v590
      %v592 = vpop.f32.mrb[0].mxu0
      %v593 = vpop.f32.mrb[0].mxu0
      %v594 = vadd.f32 %v526, %v593
      %v595 = vpop.f32.mrb[0].mxu0
      %596 = vdwg.mxu0
      %v597 = vld [vmem:[%s4] sm:$0xf]
      %v598 = vld [vmem:[%s4 + $0x4] sm:$0xf]
      %v599 = vld [vmem:[%s4 + $0x8] sm:$0xf]
      %v600 = vld [vmem:[%s4 + $0xc] sm:$0xf]
      %v605 = vunpack.c.l.b16 %v597
      %v606 = vunpack.c.l.b16 %v598
      %v607 = vunpack.c.l.b16 %v599
      %v608 = vunpack.c.l.b16 %v600
      %v609 = vpack.c.b16 %v606, %v605
      %v610 = vpack.c.b16 %v608, %v607
      %611 = vrot.lane.b32.xlu0 %v466, 126
      %v612 = vpop.permute.xlu0 %611
      %v614 = vsel %vm469, %v609, 0
      %v617 = vsel %vm469, %v610, 0
      %v620 = vsel %vm476, %v612, 0
      %622 = vmatprep.subr.bf16.mxu0 0
      %623 = vmatpush1.bf16.msra.mxu0 %v620
      %624 = vmatprep.subr.bf16.mxu0 0
      %625 = vmatpush1.bf16.msra.mxu0 0
      %626 = vmatprep.subr.bf16.mxu0 0
      %627 = vmatpush1.bf16.msra.mxu0 0
      %628 = vmatprep.subr.bf16.mxu0 0
      %629 = vmatpush1.bf16.msra.mxu0 0
      %630 = vmatprep.subr.bf16.mxu0 0
      %631 = vmatpush1.bf16.msra.mxu0 0
      %632 = vmatprep.subr.bf16.mxu0 0
      %633 = vmatpush1.bf16.msra.mxu0 0
      %634 = vmatprep.subr.bf16.mxu0 0
      %635 = vmatpush1.bf16.msra.mxu0 0
      %636 = vmatprep.subr.bf16.mxu0 0
      %637 = vmatpush1.bf16.msra.mxu0 0
      %638 = vmatprep.subr.bf16.mxu0 0
      %639 = vmatpush1.bf16.msra.mxu0 0
      %640 = vmatprep.subr.bf16.mxu0 0
      %641 = vmatpush1.bf16.msra.mxu0 0
      %642 = vmatprep.subr.bf16.mxu0 0
      %643 = vmatpush1.bf16.msra.mxu0 0
      %644 = vmatprep.subr.bf16.mxu0 0
      %645 = vmatpush1.bf16.msra.mxu0 0
      %646 = vmatprep.subr.bf16.mxu0 0
      %647 = vmatpush1.bf16.msra.mxu0 0
      %648 = vmatprep.subr.bf16.mxu0 0
      %649 = vmatpush1.bf16.msra.mxu0 0
      %650 = vmatprep.subr.bf16.mxu0 0
      %651 = vmatpush1.bf16.msra.mxu0 0
      %652 = vmatprep.subr.bf16.mxu0 0
      %653 = vmatpush1.bf16.msra.mxu0 0
      %654 = vmatprep.mubr.bf16.mxu0 0
      %655 = vmatmul.mubr.bf16.gmra.mrb[0].mxu0 %v614
      %v656 = vpop.f32.mrb[0].mxu0
      %v657 = vadd.f32 0.0, %v656
      %v658 = vpop.f32.mrb[0].mxu0
      %v659 = vpop.f32.mrb[0].mxu0
      %v660 = vadd.f32 0.0, %v659
      %v661 = vpop.f32.mrb[0].mxu0
      %662 = vmatprep.mubr.bf16.mxu0 0
      %663 = vmatmul.mubr.bf16.gmra.mrb[0].mxu0 %v617
      %v664 = vpop.f32.mrb[0].mxu0
      %v665 = vadd.f32 0.0, %v664
      %v666 = vpop.f32.mrb[0].mxu0
      %v667 = vpop.f32.mrb[0].mxu0
      %v668 = vadd.f32 0.0, %v667
      %v669 = vpop.f32.mrb[0].mxu0
      %670 = vdwg.mxu0
      %v671 = vadd.f32 %v583, %v657
      %v672 = vadd.f32 %v586, %v660
      %v673 = vadd.f32 %v591, %v665
      %v674 = vadd.f32 %v594, %v668
      %v675 = vld [vmem:[%s5] sm:$0xff]
      %v676 = vld [vmem:[%s5 + $0x8] sm:$0xff]
      %v677 = vld [vmem:[%s5 + $0x10] sm:$0xff]
      %v678 = vld [vmem:[%s5 + $0x18] sm:$0xff]
      %680 = vset.pattern.permute.xlu0 0
      %681 = vperm.xlu0 %680, %v675
      %v682 = vpop.permute.xlu0 %681
      %685 = vset.pattern.permute.xlu0 0
      %686 = vperm.xlu0 %685, %v676
      %v687 = vpop.permute.xlu0 %686
      %690 = vset.pattern.permute.xlu0 0
      %691 = vperm.xlu0 %690, %v677
      %v692 = vpop.permute.xlu0 %691
      %695 = vset.pattern.permute.xlu0 0
      %696 = vperm.xlu0 %695, %v678
      %v697 = vpop.permute.xlu0 %696
      %v699 = vadd.f32 %v671, %v682
      %v700 = vadd.f32 %v672, %v687
      %v701 = vadd.f32 %v673, %v692
      %v702 = vadd.f32 %v674, %v697
      %v703 = vld [vmem:[%s1] sm:$0x1]
      %v705 = vpack.i.b16 %v703, %v703
      %v707 = vlaneseq
      %v708 = vshrl.u32 %v707, 7
      %v709 = vsub.s32 0, %v708
      %v710 = vrot.slane %v705, %v709
      %v711 = vmul.bf16 %v440, %v710
      %v712 = vunpack.c.l.bf16 %v711
      %vm713 = vcmask 125952
      %v714 = vsel %vm713, %v712, 0.0
      %715 = vadd.xlane.f32.xlu0 %v714
      %v716 = vpop.xlane.xlu0 %715
      %v717 = vunpack.c.l.bf16 %v440
      %719 = vrot.lane.b32.xlu0 %v717, 127
      %v720 = vpop.permute.xlu0 %719
      %v722 = vsel %vm713, %v720, 0.0
      %723 = vadd.xlane.f32.xlu0 %v722
      %v724 = vpop.xlane.xlu0 %723
      %725 = vrot.lane.b32.xlu0 %v717, 126
      %v726 = vpop.permute.xlu0 %725
      %v728 = vsel %vm713, %v726, 0.0
      %729 = vadd.xlane.f32.xlu0 %v728
      %v730 = vpop.xlane.xlu0 %729
      %v731 = vld [vmem:[%s6] sm:$0xf]
      %v732 = vld [vmem:[%s7] sm:$0xf]
      %v734 = vsel %vm469, %v732, 0
      %vm736 = vcmask 1043456
      %v738 = vsel %vm736, %v724, 0
      %740 = vmatprep.subr.mxu0 0.0
      %741 = vmatpush1.msra.mxu0 %v738
      %742 = vmatprep.subr.mxu0 0.0
      %743 = vmatpush1.msra.mxu0 0.0
      %744 = vmatprep.subr.mxu0 0.0
      %745 = vmatpush1.msra.mxu0 0.0
      %746 = vmatprep.subr.mxu0 0.0
      %747 = vmatpush1.msra.mxu0 0.0
      %748 = vmatprep.subr.mxu0 0.0
      %749 = vmatpush1.msra.mxu0 0.0
      %750 = vmatprep.subr.mxu0 0.0
      %751 = vmatpush1.msra.mxu0 0.0
      %752 = vmatprep.subr.mxu0 0.0
      %753 = vmatpush1.msra.mxu0 0.0
      %754 = vmatprep.subr.mxu0 0.0
      %755 = vmatpush1.msra.mxu0 0.0
      %756 = vmatprep.subr.mxu0 0.0
      %757 = vmatpush1.msra.mxu0 0.0
      %758 = vmatprep.subr.mxu0 0.0
      %759 = vmatpush1.msra.mxu0 0.0
      %760 = vmatprep.subr.mxu0 0.0
      %761 = vmatpush1.msra.mxu0 0.0
      %762 = vmatprep.subr.mxu0 0.0
      %763 = vmatpush1.msra.mxu0 0.0
      %764 = vmatprep.subr.mxu0 0.0
      %765 = vmatpush1.msra.mxu0 0.0
      %766 = vmatprep.subr.mxu0 0.0
      %767 = vmatpush1.msra.mxu0 0.0
      %768 = vmatprep.subr.mxu0 0.0
      %769 = vmatpush1.msra.mxu0 0.0
      %770 = vmatprep.subr.mxu0 0.0
      %771 = vmatpush1.msra.mxu0 0.0
      %772 = vmatprep.subr.mxu0 0.0
      %773 = vmatpush1.msra.mxu0 0.0
      %774 = vmatprep.subr.mxu0 0.0
      %775 = vmatpush1.msra.mxu0 0.0
      %776 = vmatprep.subr.mxu0 0.0
      %777 = vmatpush1.msra.mxu0 0.0
      %778 = vmatprep.subr.mxu0 0.0
      %779 = vmatpush1.msra.mxu0 0.0
      %780 = vmatprep.subr.mxu0 0.0
      %781 = vmatpush1.msra.mxu0 0.0
      %782 = vmatprep.subr.mxu0 0.0
      %783 = vmatpush1.msra.mxu0 0.0
      %784 = vmatprep.subr.mxu0 0.0
      %785 = vmatpush1.msra.mxu0 0.0
      %786 = vmatprep.subr.mxu0 0.0
      %787 = vmatpush1.msra.mxu0 0.0
      %788 = vmatprep.subr.mxu0 0.0
      %789 = vmatpush1.msra.mxu0 0.0
      %790 = vmatprep.subr.mxu0 0.0
      %791 = vmatpush1.msra.mxu0 0.0
      %792 = vmatprep.subr.mxu0 0.0
      %793 = vmatpush1.msra.mxu0 0.0
      %794 = vmatprep.subr.mxu0 0.0
      %795 = vmatpush1.msra.mxu0 0.0
      %796 = vmatprep.subr.mxu0 0.0
      %797 = vmatpush1.msra.mxu0 0.0
      %798 = vmatprep.subr.mxu0 0.0
      %799 = vmatpush1.msra.mxu0 0.0
      %800 = vmatprep.subr.mxu0 0.0
      %801 = vmatpush1.msra.mxu0 0.0
      %802 = vmatprep.subr.mxu0 0.0
      %803 = vmatpush1.msra.mxu0 0.0
      %804 = vmatprep.mubr.f32.mxu0 0.0
      %805 = vmatmul.mubr.f32.gmra.mrb[0].mxu0 %v734
      %v806 = vpop.f32.mrb[0].mxu0
      %v807 = vadd.f32 0.0, %v806
      %v808 = vpop.f32.mrb[0].mxu0
      %809 = vdwg.mxu0
      %v811 = vsel %vm469, %v731, 0
      %v814 = vsel %vm736, %v716, 0
      %816 = vmatprep.subr.mxu0 0.0
      %817 = vmatpush1.msra.mxu0 %v814
      %818 = vmatprep.subr.mxu0 0.0
      %819 = vmatpush1.msra.mxu0 0.0
      %820 = vmatprep.subr.mxu0 0.0
      %821 = vmatpush1.msra.mxu0 0.0
      %822 = vmatprep.subr.mxu0 0.0
      %823 = vmatpush1.msra.mxu0 0.0
      %824 = vmatprep.subr.mxu0 0.0
      %825 = vmatpush1.msra.mxu0 0.0
      %826 = vmatprep.subr.mxu0 0.0
      %827 = vmatpush1.msra.mxu0 0.0
      %828 = vmatprep.subr.mxu0 0.0
      %829 = vmatpush1.msra.mxu0 0.0
      %830 = vmatprep.subr.mxu0 0.0
      %831 = vmatpush1.msra.mxu0 0.0
      %832 = vmatprep.subr.mxu0 0.0
      %833 = vmatpush1.msra.mxu0 0.0
      %834 = vmatprep.subr.mxu0 0.0
      %835 = vmatpush1.msra.mxu0 0.0
      %836 = vmatprep.subr.mxu0 0.0
      %837 = vmatpush1.msra.mxu0 0.0
      %838 = vmatprep.subr.mxu0 0.0
      %839 = vmatpush1.msra.mxu0 0.0
      %840 = vmatprep.subr.mxu0 0.0
      %841 = vmatpush1.msra.mxu0 0.0
      %842 = vmatprep.subr.mxu0 0.0
      %843 = vmatpush1.msra.mxu0 0.0
      %844 = vmatprep.subr.mxu0 0.0
      %845 = vmatpush1.msra.mxu0 0.0
      %846 = vmatprep.subr.mxu0 0.0
      %847 = vmatpush1.msra.mxu0 0.0
      %848 = vmatprep.subr.mxu0 0.0
      %849 = vmatpush1.msra.mxu0 0.0
      %850 = vmatprep.subr.mxu0 0.0
      %851 = vmatpush1.msra.mxu0 0.0
      %852 = vmatprep.subr.mxu0 0.0
      %853 = vmatpush1.msra.mxu0 0.0
      %854 = vmatprep.subr.mxu0 0.0
      %855 = vmatpush1.msra.mxu0 0.0
      %856 = vmatprep.subr.mxu0 0.0
      %857 = vmatpush1.msra.mxu0 0.0
      %858 = vmatprep.subr.mxu0 0.0
      %859 = vmatpush1.msra.mxu0 0.0
      %860 = vmatprep.subr.mxu0 0.0
      %861 = vmatpush1.msra.mxu0 0.0
      %862 = vmatprep.subr.mxu0 0.0
      %863 = vmatpush1.msra.mxu0 0.0
      %864 = vmatprep.subr.mxu0 0.0
      %865 = vmatpush1.msra.mxu0 0.0
      %866 = vmatprep.subr.mxu0 0.0
      %867 = vmatpush1.msra.mxu0 0.0
      %868 = vmatprep.subr.mxu0 0.0
      %869 = vmatpush1.msra.mxu0 0.0
      %870 = vmatprep.subr.mxu0 0.0
      %871 = vmatpush1.msra.mxu0 0.0
      %872 = vmatprep.subr.mxu0 0.0
      %873 = vmatpush1.msra.mxu0 0.0
      %874 = vmatprep.subr.mxu0 0.0
      %875 = vmatpush1.msra.mxu0 0.0
      %876 = vmatprep.subr.mxu0 0.0
      %877 = vmatpush1.msra.mxu0 0.0
      %878 = vmatprep.subr.mxu0 0.0
      %879 = vmatpush1.msra.mxu0 0.0
      %880 = vmatprep.mubr.f32.mxu0 0.0
      %881 = vmatmul.mubr.f32.gmra.mrb[0].mxu0 %v811
      %v882 = vpop.f32.mrb[0].mxu0
      %v883 = vadd.f32 %v807, %v882
      %v884 = vpop.f32.mrb[0].mxu0
      %885 = vdwg.mxu0
      %v886 = vld [vmem:[%s8] sm:$0xf]
      %v888 = vsel %vm469, %v886, 0
      %v891 = vsel %vm736, %v730, 0
      %893 = vmatprep.subr.mxu0 0.0
      %894 = vmatpush1.msra.mxu0 %v891
      %895 = vmatprep.subr.mxu0 0.0
      %896 = vmatpush1.msra.mxu0 0.0
      %897 = vmatprep.subr.mxu0 0.0
      %898 = vmatpush1.msra.mxu0 0.0
      %899 = vmatprep.subr.mxu0 0.0
      %900 = vmatpush1.msra.mxu0 0.0
      %901 = vmatprep.subr.mxu0 0.0
      %902 = vmatpush1.msra.mxu0 0.0
      %903 = vmatprep.subr.mxu0 0.0
      %904 = vmatpush1.msra.mxu0 0.0
      %905 = vmatprep.subr.mxu0 0.0
      %906 = vmatpush1.msra.mxu0 0.0
      %907 = vmatprep.subr.mxu0 0.0
      %908 = vmatpush1.msra.mxu0 0.0
      %909 = vmatprep.subr.mxu0 0.0
      %910 = vmatpush1.msra.mxu0 0.0
      %911 = vmatprep.subr.mxu0 0.0
      %912 = vmatpush1.msra.mxu0 0.0
      %913 = vmatprep.subr.mxu0 0.0
      %914 = vmatpush1.msra.mxu0 0.0
      %915 = vmatprep.subr.mxu0 0.0
      %916 = vmatpush1.msra.mxu0 0.0
      %917 = vmatprep.subr.mxu0 0.0
      %918 = vmatpush1.msra.mxu0 0.0
      %919 = vmatprep.subr.mxu0 0.0
      %920 = vmatpush1.msra.mxu0 0.0
      %921 = vmatprep.subr.mxu0 0.0
      %922 = vmatpush1.msra.mxu0 0.0
      %923 = vmatprep.subr.mxu0 0.0
      %924 = vmatpush1.msra.mxu0 0.0
      %925 = vmatprep.subr.mxu0 0.0
      %926 = vmatpush1.msra.mxu0 0.0
      %927 = vmatprep.subr.mxu0 0.0
      %928 = vmatpush1.msra.mxu0 0.0
      %929 = vmatprep.subr.mxu0 0.0
      %930 = vmatpush1.msra.mxu0 0.0
      %931 = vmatprep.subr.mxu0 0.0
      %932 = vmatpush1.msra.mxu0 0.0
      %933 = vmatprep.subr.mxu0 0.0
      %934 = vmatpush1.msra.mxu0 0.0
      %935 = vmatprep.subr.mxu0 0.0
      %936 = vmatpush1.msra.mxu0 0.0
      %937 = vmatprep.subr.mxu0 0.0
      %938 = vmatpush1.msra.mxu0 0.0
      %939 = vmatprep.subr.mxu0 0.0
      %940 = vmatpush1.msra.mxu0 0.0
      %941 = vmatprep.subr.mxu0 0.0
      %942 = vmatpush1.msra.mxu0 0.0
      %943 = vmatprep.subr.mxu0 0.0
      %944 = vmatpush1.msra.mxu0 0.0
      %945 = vmatprep.subr.mxu0 0.0
      %946 = vmatpush1.msra.mxu0 0.0
      %947 = vmatprep.subr.mxu0 0.0
      %948 = vmatpush1.msra.mxu0 0.0
      %949 = vmatprep.subr.mxu0 0.0
      %950 = vmatpush1.msra.mxu0 0.0
      %951 = vmatprep.subr.mxu0 0.0
      %952 = vmatpush1.msra.mxu0 0.0
      %953 = vmatprep.subr.mxu0 0.0
      %954 = vmatpush1.msra.mxu0 0.0
      %955 = vmatprep.subr.mxu0 0.0
      %956 = vmatpush1.msra.mxu0 0.0
      %957 = vmatprep.mubr.f32.mxu0 0.0
      %958 = vmatmul.mubr.f32.gmra.mrb[0].mxu0 %v888
      %v959 = vpop.f32.mrb[0].mxu0
      %v960 = vadd.f32 0.0, %v959
      %v961 = vpop.f32.mrb[0].mxu0
      %962 = vdwg.mxu0
      %v963 = vadd.f32 %v883, %v960
      %v964 = vld [vmem:[%s9] sm:$0xf]
      %v965 = vadd.f32 %v963, %v964
      %s966 = sld [smem:[#allocation2]]
      %vm967 = vcmp.ge.f32.partialorder %v965, 0.0
      %v968 = vstv %s966
      %v969 = vmul.f32 %v968, %v965
      %v970 = vsel %vm967, %v965, %v969
      %v971 = vld [vmem:[%s11] sm:$0xff]
      %v972 = vld [vmem:[%s11 + $0x8] sm:$0xff]
      %v973 = vld [vmem:[%s11 + $0x10] sm:$0xff]
      %v974 = vld [vmem:[%s11 + $0x18] sm:$0xff]
      %v975 = vld [vmem:[%s12] sm:$0xff]
      %v976 = vld [vmem:[%s12 + $0x8] sm:$0xff]
      %v977 = vld [vmem:[%s12 + $0x10] sm:$0xff]
      %v978 = vld [vmem:[%s12 + $0x18] sm:$0xff]
      %v980 = vsel %vm469, %v971, 0
      %v983 = vsel %vm469, %v972, 0
      %v986 = vsel %vm469, %v973, 0
      %v989 = vsel %vm469, %v974, 0
      %v992 = vsel %vm736, %v970, 0
      %994 = vmatprep.subr.mxu0 0.0
      %995 = vmatpush1.msra.mxu0 %v992
      %996 = vmatprep.subr.mxu0 0.0
      %997 = vmatpush1.msra.mxu0 0.0
      %998 = vmatprep.subr.mxu0 0.0
      %999 = vmatpush1.msra.mxu0 0.0
      %1000 = vmatprep.subr.mxu0 0.0
      %1001 = vmatpush1.msra.mxu0 0.0
      %1002 = vmatprep.subr.mxu0 0.0
      %1003 = vmatpush1.msra.mxu0 0.0
      %1004 = vmatprep.subr.mxu0 0.0
      %1005 = vmatpush1.msra.mxu0 0.0
      %1006 = vmatprep.subr.mxu0 0.0
      %1007 = vmatpush1.msra.mxu0 0.0
      %1008 = vmatprep.subr.mxu0 0.0
      %1009 = vmatpush1.msra.mxu0 0.0
      %1010 = vmatprep.subr.mxu0 0.0
      %1011 = vmatpush1.msra.mxu0 0.0
      %1012 = vmatprep.subr.mxu0 0.0
      %1013 = vmatpush1.msra.mxu0 0.0
      %1014 = vmatprep.subr.mxu0 0.0
      %1015 = vmatpush1.msra.mxu0 0.0
      %1016 = vmatprep.subr.mxu0 0.0
      %1017 = vmatpush1.msra.mxu0 0.0
      %1018 = vmatprep.subr.mxu0 0.0
      %1019 = vmatpush1.msra.mxu0 0.0
      %1020 = vmatprep.subr.mxu0 0.0
      %1021 = vmatpush1.msra.mxu0 0.0
      %1022 = vmatprep.subr.mxu0 0.0
      %1023 = vmatpush1.msra.mxu0 0.0
      %1024 = vmatprep.subr.mxu0 0.0
      %1025 = vmatpush1.msra.mxu0 0.0
      %1026 = vmatprep.subr.mxu0 0.0
      %1027 = vmatpush1.msra.mxu0 0.0
      %1028 = vmatprep.subr.mxu0 0.0
      %1029 = vmatpush1.msra.mxu0 0.0
      %1030 = vmatprep.subr.mxu0 0.0
      %1031 = vmatpush1.msra.mxu0 0.0
      %1032 = vmatprep.subr.mxu0 0.0
      %1033 = vmatpush1.msra.mxu0 0.0
      %1034 = vmatprep.subr.mxu0 0.0
      %1035 = vmatpush1.msra.mxu0 0.0
      %1036 = vmatprep.subr.mxu0 0.0
      %1037 = vmatpush1.msra.mxu0 0.0
      %1038 = vmatprep.subr.mxu0 0.0
      %1039 = vmatpush1.msra.mxu0 0.0
      %1040 = vmatprep.subr.mxu0 0.0
      %1041 = vmatpush1.msra.mxu0 0.0
      %1042 = vmatprep.subr.mxu0 0.0
      %1043 = vmatpush1.msra.mxu0 0.0
      %1044 = vmatprep.subr.mxu0 0.0
      %1045 = vmatpush1.msra.mxu0 0.0
      %1046 = vmatprep.subr.mxu0 0.0
      %1047 = vmatpush1.msra.mxu0 0.0
      %1048 = vmatprep.subr.mxu0 0.0
      %1049 = vmatpush1.msra.mxu0 0.0
      %1050 = vmatprep.subr.mxu0 0.0
      %1051 = vmatpush1.msra.mxu0 0.0
      %1052 = vmatprep.subr.mxu0 0.0
      %1053 = vmatpush1.msra.mxu0 0.0
      %1054 = vmatprep.subr.mxu0 0.0
      %1055 = vmatpush1.msra.mxu0 0.0
      %1056 = vmatprep.subr.mxu0 0.0
      %1057 = vmatpush1.msra.mxu0 0.0
      %1058 = vmatprep.mubr.f32.mxu0 0.0
      %1059 = vmatmul.mubr.f32.gmra.mrb[0].mxu0 %v980
      %v1060 = vpop.f32.mrb[0].mxu0
      %v1061 = vadd.f32 %v975, %v1060
      %v1062 = vpop.f32.mrb[0].mxu0
      %1063 = vmatprep.mubr.f32.mxu0 0.0
      %1064 = vmatmul.mubr.f32.gmra.mrb[0].mxu0 %v983
      %v1065 = vpop.f32.mrb[0].mxu0
      %v1066 = vadd.f32 %v976, %v1065
      %v1067 = vpop.f32.mrb[0].mxu0
      %1068 = vmatprep.mubr.f32.mxu0 0.0
      %1069 = vmatmul.mubr.f32.gmra.mrb[0].mxu0 %v986
      %v1070 = vpop.f32.mrb[0].mxu0
      %v1071 = vadd.f32 %v977, %v1070
      %v1072 = vpop.f32.mrb[0].mxu0
      %1073 = vmatprep.mubr.f32.mxu0 0.0
      %1074 = vmatmul.mubr.f32.gmra.mrb[0].mxu0 %v989
      %v1075 = vpop.f32.mrb[0].mxu0
      %v1076 = vadd.f32 %v978, %v1075
      %v1077 = vpop.f32.mrb[0].mxu0
      %1078 = vdwg.mxu0
      %v1079 = vxor.u32 %v1061, 2147483648
      %v1080 = vxor.u32 %v1066, 2147483648
      %v1081 = vxor.u32 %v1071, 2147483648
      %v1082 = vxor.u32 %v1076, 2147483648
      %v1083 = vmul.f32 %v1079, 1.442695
      %v1084 = vpow.pop %v1083
      %v1085 = vmul.f32 %v1080, 1.442695
      %v1086 = vpow.pop %v1085
      %v1087 = vmul.f32 %v1081, 1.442695
      %v1088 = vpow.pop %v1087
      %v1089 = vmul.f32 %v1082, 1.442695
      %v1090 = vpow.pop %v1089
      %v1091 = vadd.f32 %v1084, 1.0
      %v1092 = vadd.f32 %v1086, 1.0
      %v1093 = vadd.f32 %v1088, 1.0
      %v1094 = vadd.f32 %v1090, 1.0
      %v1095 = vrcp.pop %v1091
      %v1096 = vmul.f32 1.0, %v1095
      %v1097 = vrcp.pop %v1092
      %v1098 = vmul.f32 1.0, %v1097
      %v1099 = vrcp.pop %v1093
      %v1100 = vmul.f32 1.0, %v1099
      %v1101 = vrcp.pop %v1094
      %v1102 = vmul.f32 1.0, %v1101
      %1104 = vset.pattern.permute.xlu0 0
      %1105 = vperm.xlu0 %1104, %v1096
      %v1106 = vpop.permute.xlu0 %1105
      %1109 = vset.pattern.permute.xlu0 0
      %1110 = vperm.xlu0 %1109, %v1098
      %v1111 = vpop.permute.xlu0 %1110
      %1114 = vset.pattern.permute.xlu0 0
      %1115 = vperm.xlu0 %1114, %v1100
      %v1116 = vpop.permute.xlu0 %1115
      %1119 = vset.pattern.permute.xlu0 0
      %1120 = vperm.xlu0 %1119, %v1102
      %v1121 = vpop.permute.xlu0 %1120
      %v1123 = vmul.f32 %v1106, %v699
      %v1124 = vmul.f32 %v1111, %v700
      %v1125 = vmul.f32 %v1116, %v701
      %v1126 = vmul.f32 %v1121, %v702
      %v1127 = vmax.f32 %v1123, 0.0
      %v1128 = vmax.f32 %v1124, 0.0
      %v1129 = vmax.f32 %v1125, 0.0
      %v1130 = vmax.f32 %v1126, 0.0
      %vm1131 = vcmask 130048
      %1132 = vst.msk [vmem:[%s438] sm:$0xff] %vm1131, %v1127
      %1133 = vst.msk [vmem:[%s438 + $0x8] sm:$0xff] %vm1131, %v1128
      %1134 = vst.msk [vmem:[%s438 + $0x10] sm:$0xff] %vm1131, %v1129
      %1135 = vst.msk [vmem:[%s438 + $0x18] sm:$0xff] %vm1131, %v1130
      %p1136 = scmp.lt.s32.totalorder %s25, 1
      %s1137 = scalar_select %p1136, %s25, 1
      %s1138 = smul.addr %s1137, 4
      %s1139 = smul.addr %s1138, 8
      %s1140 = scalar_lea.vmem %s13, %s1139
      // Predicated region
      $region73: #{tpu_custom_call.1} parent=71 // pred_check
        %p1141 = pneg %p321
      $region74: #{tpu_custom_call.1} parent=71 // pred_check_branch
        %1143 = sbr.rel (%p1141) target = $region76
      $region75: #{tpu_custom_call.1} parent=71 // pred_region
        _
      $region76: #{tpu_custom_call.1} parent=71 // pred_fallthru
        _
    $region72: #{tpu_custom_call.1} parent=5 // pred_fallthru
      _
    %p1144 = scmp.le.s32.totalorder 2, %s20
    // Predicated region
    $region77: #{tpu_custom_call.1} parent=5 // pred_check
      %p1145 = pneg %p1144
    $region78: #{tpu_custom_call.1} parent=5 // pred_check_branch
      %1147 = sbr.rel (%p1145) target = $region80
    $region79: #{tpu_custom_call.1} parent=5 // pred_region
      %s1148 = ssub.s32 %s20, 2
      // Predicated region
      $region81: #{tpu_custom_call.1} parent=79 // pred_check
        %p1149 = pneg %p327
      $region82: #{tpu_custom_call.1} parent=79 // pred_check_branch
        %1151 = sbr.rel (%p1149) target = $region84
      $region83: #{tpu_custom_call.1} parent=79 // pred_region
        %p1152 = scmp.lt.s32.totalorder %s26, 1
        %s1153 = scalar_select %p1152, %s26, 1
        %s1154 = smul.addr %s1153, 4
        %s1155 = smul.addr %s1154, 8
        %s1156 = scalar_lea.vmem %s13, %s1155
      $region84: #{tpu_custom_call.1} parent=79 // pred_fallthru
        _
    $region80: #{tpu_custom_call.1} parent=5 // pred_fallthru
      _
  $region6: #{tpu_custom_call.1} parent=0 // loop_footer
    %s24 = sadd.s32 1, %s20
  $region7: #{tpu_custom_call.1} parent=0 // loop_footer_branch
    %19 = sbr.rel target = $region3
  $region8: #{tpu_custom_call.1} parent=0 // loop_exit
    _

</llo_original>
